<compile_context>
chip_gen: v5e
topology: v5e:2x2
jax: 0.10.0
libtpu: 0.0.40
codegen_flags: <defaults>
</compile_context>

<pallas_src>
import functools

import jax
import jax.numpy as jnp
from jax.experimental import pallas as pl
from jax.experimental.pallas import tpu as pltpu

# Model hyper-parameters (match the PyTorch module defaults).
STATE_DIM = 32
ACTION_SPACE = 4
N_ATOMS = 51
ATOM_PAD = 128                 # per-action atom group width for matmul/softmax
ATOM_SUB = 64                  # per-action atom group width in the packed output
FC1 = 128
FC2 = 128
FC3 = 128
LEAKY_SLOPE = 0.01             # F.leaky_relu default negative_slope
NEG_INF_BIAS = -1e30           # pad-column bias -> exp() == 0 in the softmax

assert ACTION_SPACE % 2 == 0 and N_ATOMS <= ATOM_SUB == ATOM_PAD // 2
OUT_WIDTH = (ACTION_SPACE // 2) * ATOM_PAD        # 256 lanes / row (packed pairs)


def _leaky_relu(x):
    return jnp.where(x > 0, x, LEAKY_SLOPE * x)


def q_kernel(x_ref, w1_ref, b1_ref, w2_ref, b2_ref, w3_ref, b3_ref,
             w4_ref, b4_ref, out_ref, *, action_space, atom_pad, atom_sub):
    """Fused MLP forward + per-action softmax on one (TB, ·) batch tile."""
    # bf16 MXU inputs, f32 accumulation; activation/bias math kept in f32.
    h = x_ref[...]                                               # bf16 (TB, 32)
    for w_ref, b_ref in ((w1_ref, b1_ref), (w2_ref, b2_ref), (w3_ref, b3_ref)):
        y = jnp.dot(h, w_ref[...], preferred_element_type=jnp.float32) + b_ref[...]
        h = _leaky_relu(y).astype(jnp.bfloat16)

    # (TB, action_space*128) f32 logits; pad columns (atoms 51..127 of each
    # action) carry a -1e30 bias so exp() of pad lanes is exactly 0.
    logits = jnp.dot(h, w4_ref[...], preferred_element_type=jnp.float32) + b4_ref[...]

    def softmax_group(a):
        g = logits[:, a * atom_pad:(a + 1) * atom_pad]           # 128-lane aligned
        e = jnp.exp(g - jnp.max(g, axis=-1, keepdims=True))      # pad lanes -> 0
        # Exact normalization: the divide is only on the (TB, 1) row-sum column.
        return e * (1.0 / jnp.sum(e, axis=-1, keepdims=True))

    # Compact each action pair into one 128-lane group: even action's atoms in
    # lanes [0, 64), odd action's atoms in lanes [64, 128).  Atoms occupy lanes
    # 0..50 of each part and the rest are exact zeros, so roll-by-64 + add is an
    # exact interleave with no masking.  Each store is a 128-aligned full-vreg vst.
    for pair in range(action_space // 2):
        p_even = softmax_group(2 * pair)
        p_odd = softmax_group(2 * pair + 1)
        out_ref[:, pair * atom_pad:(pair + 1) * atom_pad] = (
            p_even + pltpu.roll(p_odd, shift=atom_sub, axis=1))


def _round_up8(n):
    return ((n + 7) // 8) * 8


def _batch_tile(batch):
    """Single tile for small batches; otherwise >=4 grid steps (v7x megacore
    sharding + output-DMA/compute overlap) with tiles capped at 2048 rows to
    amortize the ~0.35us/step overhead on single-TC v5e/v6e."""
    if batch <= 128:
        return max(8, _round_up8(batch))
    return min(2048, _round_up8(pl.cdiv(batch, 4)))


def q_forward(x, packed_params):
    """Runs the fused Pallas kernel; returns (B, action_space, n_atoms) probs."""
    w1, b1, w2, b2, w3, b3, w4, b4 = packed_params
    B = x.shape[0]
    tb = _batch_tile(B)

    x = x.astype(jnp.bfloat16)      # halve activation DMA bytes; f32 accum in-kernel

    def resident(arr):
        # Constant index_map => same block every grid step => DMA'd once and
        # VMEM-resident.  (pl.Buffered(1) could also drop the redundant second
        # buffer, but the ~200 KB saving is not worth a lowering corner case.)
        return pl.BlockSpec(arr.shape, lambda i: (0, 0))

    out_flat = pl.pallas_call(
        functools.partial(q_kernel, action_space=ACTION_SPACE,
                          atom_pad=ATOM_PAD, atom_sub=ATOM_SUB),
        out_shape=jax.ShapeDtypeStruct((B, OUT_WIDTH), jnp.float32),
        grid=(pl.cdiv(B, tb),),
        in_specs=[
            pl.BlockSpec((tb, STATE_DIM), lambda i: (i, 0)),
            resident(w1), resident(b1),
            resident(w2), resident(b2),
            resident(w3), resident(b3),
            resident(w4), resident(b4),
        ],
        out_specs=pl.BlockSpec((tb, OUT_WIDTH), lambda i: (i, 0)),
        compiler_params=pltpu.CompilerParams(
            dimension_semantics=("parallel",),          # megacore sharding on v7x
            vmem_limit_bytes=32 * 1024 * 1024,          # safe on v5e/v6e/v7x
        ),
    )(x, w1, b1, w2, b2, w3, b3, w4, b4)

    # (B, 256) -> (B, 4, 64) is a free view; the final atom strip now reads the
    # compacted 256-lane rows (half the bytes of the previous 512-wide layout).
    out = out_flat.reshape(B, ACTION_SPACE, ATOM_SUB)
    return out[:, :, :N_ATOMS]


def init_params(key):
    """Torch-style f32 params: U(-1/sqrt(fan_in), +), weights stored (in, out)."""
    dims = [(STATE_DIM, FC1), (FC1, FC2), (FC2, FC3), (FC3, ACTION_SPACE * N_ATOMS)]
    params = []
    for fan_in, fan_out in dims:
        key, kw, kb = jax.random.split(key, 3)
        bound = 1.0 / jnp.sqrt(jnp.float32(fan_in))
        w = jax.random.uniform(kw, (fan_in, fan_out), jnp.float32, -bound, bound)
        b = jax.random.uniform(kb, (1, fan_out), jnp.float32, -bound, bound)
        params.extend([w, b])
    return tuple(params)


def pack_params(params):
    """Kernel-ready params: bf16 weights, f32 biases, layer-4 padded to 4*128
    with zero pad weights and -1e30 pad biases."""
    w1, b1, w2, b2, w3, b3, w4, b4 = params
    w4p = jnp.zeros((FC3, ACTION_SPACE * ATOM_PAD), jnp.float32)
    b4p = jnp.full((1, ACTION_SPACE * ATOM_PAD), NEG_INF_BIAS, jnp.float32)
    for a in range(ACTION_SPACE):
        lo, hi = a * ATOM_PAD, a * ATOM_PAD + N_ATOMS
        w4p = w4p.at[:, lo:hi].set(w4[:, a * N_ATOMS:(a + 1) * N_ATOMS])
        b4p = b4p.at[:, lo:hi].set(b4[:, a * N_ATOMS:(a + 1) * N_ATOMS])
    bf16 = lambda w: w.astype(jnp.bfloat16)
    return (bf16(w1), b1, bf16(w2), b2, bf16(w3), b3, bf16(w4p), b4p)


def q_forward_ref(x, packed_params):
    """Pure-JAX reference with the kernel's numerics (bf16 dots, f32 accum)."""
    w1, b1, w2, b2, w3, b3, w4, b4 = packed_params
    h = x.astype(jnp.bfloat16)
    for w, b in ((w1, b1), (w2, b2), (w3, b3)):
        h = _leaky_relu(jnp.dot(h, w, preferred_element_type=jnp.float32) + b)
        h = h.astype(jnp.bfloat16)
    logits = jnp.dot(h, w4, preferred_element_type=jnp.float32) + b4
    probs = jax.nn.softmax(logits.reshape(-1, ACTION_SPACE, ATOM_PAD), axis=-1)
    return probs[:, :, :N_ATOMS]


def q_forward_ref_f32(x, params):
    """Original-semantics (full f32) reference for loose-tolerance checking."""
    w1, b1, w2, b2, w3, b3, w4, b4 = params
    h = _leaky_relu(x @ w1 + b1)
    h = _leaky_relu(h @ w2 + b2)
    h = _leaky_relu(h @ w3 + b3)
    logits = (h @ w4 + b4).reshape(-1, ACTION_SPACE, N_ATOMS)
    return jax.nn.softmax(logits, axis=-1)


if __name__ == "__main__":
    key = jax.random.PRNGKey(0)
    key, kx = jax.random.split(key)
    batch = 8
    x = jax.random.normal(kx, (batch, STATE_DIM), jnp.float32)

    params = init_params(key)
    packed = pack_params(params)

    out = q_forward(x, packed)
    out = jax.block_until_ready(out)

    assert out.shape == (batch, ACTION_SPACE, N_ATOMS)
    # Exact normalization -> per-action atom distributions sum to 1.
    assert jnp.allclose(jnp.sum(out, axis=-1), 1.0, atol=1e-4)
    # Matches the bf16/f32-accum reference tightly.
    ref = q_forward_ref(x, packed)
    assert jnp.allclose(out, ref, atol=1e-4, rtol=1e-4)
    # And preserves the original full-f32 semantics to bf16-level tolerance.
    ref32 = q_forward_ref_f32(x, params)
    assert jnp.allclose(out, ref32, atol=3e-2)

    print("KERNEL_OK")
</pallas_src>

<mosaic_0001>
module attributes {stable_mosaic.version = 11 : i64} {
  func.func @q_kernel(%arg0: i32, %arg1: memref<8x32xbf16, #tpu.memory_space<vmem>>, %arg2: memref<32x128xbf16, #tpu.memory_space<vmem>>, %arg3: memref<1x128xf32, #tpu.memory_space<vmem>>, %arg4: memref<128x128xbf16, #tpu.memory_space<vmem>>, %arg5: memref<1x128xf32, #tpu.memory_space<vmem>>, %arg6: memref<128x128xbf16, #tpu.memory_space<vmem>>, %arg7: memref<1x128xf32, #tpu.memory_space<vmem>>, %arg8: memref<128x512xbf16, #tpu.memory_space<vmem>>, %arg9: memref<1x512xf32, #tpu.memory_space<vmem>>, %arg10: memref<8x256xf32, #tpu.memory_space<vmem>>) attributes {dimension_semantics = [#tpu.dimension_semantics<parallel>], iteration_bounds = array<i64: 1>, scalar_prefetch = 0 : i64, scratch_operands = 0 : i64, tpu.core_type = #tpu.core_type<tc>, window_params = [{transform_indices = @transform_0, window_bounds = array<i64: 8, 32>}, {pipeline_mode = #tpu.pipeline_mode<synchronous>, transform_indices = @transform_1, window_bounds = array<i64: 32, 128>}, {pipeline_mode = #tpu.pipeline_mode<synchronous>, transform_indices = @transform_2, window_bounds = array<i64: 1, 128>}, {pipeline_mode = #tpu.pipeline_mode<synchronous>, transform_indices = @transform_3, window_bounds = array<i64: 128, 128>}, {pipeline_mode = #tpu.pipeline_mode<synchronous>, transform_indices = @transform_4, window_bounds = array<i64: 1, 128>}, {pipeline_mode = #tpu.pipeline_mode<synchronous>, transform_indices = @transform_5, window_bounds = array<i64: 128, 128>}, {pipeline_mode = #tpu.pipeline_mode<synchronous>, transform_indices = @transform_6, window_bounds = array<i64: 1, 128>}, {pipeline_mode = #tpu.pipeline_mode<synchronous>, transform_indices = @transform_7, window_bounds = array<i64: 128, 512>}, {pipeline_mode = #tpu.pipeline_mode<synchronous>, transform_indices = @transform_8, window_bounds = array<i64: 1, 512>}, {transform_indices = @transform_9, window_bounds = array<i64: 8, 256>}]} {
    %c0 = arith.constant 0 : index
    %c0_0 = arith.constant 0 : index
    %0 = vector.load %arg1[%c0, %c0_0] : memref<8x32xbf16, #tpu.memory_space<vmem>>, vector<8x32xbf16>
    %c0_1 = arith.constant 0 : index
    %c0_2 = arith.constant 0 : index
    %1 = vector.load %arg2[%c0_1, %c0_2] : memref<32x128xbf16, #tpu.memory_space<vmem>>, vector<32x128xbf16>
    %cst = arith.constant dense<0.000000e+00> : vector<8x128xf32>
    %2 = tpu.matmul %0, %1, %cst {dimension_numbers = #tpu.dot_dimension_numbers<[1], [0], [0], [1], [0, 0, 1, 1], [], []>} : vector<8x32xbf16>, vector<32x128xbf16>, vector<8x128xf32> -> vector<8x128xf32>
    %c0_3 = arith.constant 0 : index
    %c0_4 = arith.constant 0 : index
    %3 = vector.load %arg3[%c0_3, %c0_4] : memref<1x128xf32, #tpu.memory_space<vmem>>, vector<1x128xf32>
    %4 = vector.broadcast %3 : vector<1x128xf32> to vector<8x128xf32>
    %5 = arith.addf %2, %4 : vector<8x128xf32>
    %cst_5 = arith.constant 0.000000e+00 : f32
    %6 = vector.broadcast %cst_5 : f32 to vector<8x128xf32>
    %7 = arith.cmpf ogt, %5, %6 : vector<8x128xf32>
    %cst_6 = arith.constant 0.00999999977 : f32
    %8 = vector.broadcast %cst_6 : f32 to vector<8x128xf32>
    %9 = arith.mulf %8, %5 : vector<8x128xf32>
    %10 = arith.select %7, %5, %9 : vector<8x128xi1>, vector<8x128xf32>
    %11 = arith.truncf %10 : vector<8x128xf32> to vector<8x128xbf16>
    %c0_7 = arith.constant 0 : index
    %c0_8 = arith.constant 0 : index
    %12 = vector.load %arg4[%c0_7, %c0_8] : memref<128x128xbf16, #tpu.memory_space<vmem>>, vector<128x128xbf16>
    %cst_9 = arith.constant dense<0.000000e+00> : vector<8x128xf32>
    %13 = tpu.matmul %11, %12, %cst_9 {dimension_numbers = #tpu.dot_dimension_numbers<[1], [0], [0], [1], [0, 0, 1, 1], [], []>} : vector<8x128xbf16>, vector<128x128xbf16>, vector<8x128xf32> -> vector<8x128xf32>
    %c0_10 = arith.constant 0 : index
    %c0_11 = arith.constant 0 : index
    %14 = vector.load %arg5[%c0_10, %c0_11] : memref<1x128xf32, #tpu.memory_space<vmem>>, vector<1x128xf32>
    %15 = vector.broadcast %14 : vector<1x128xf32> to vector<8x128xf32>
    %16 = arith.addf %13, %15 : vector<8x128xf32>
    %cst_12 = arith.constant 0.000000e+00 : f32
    %17 = vector.broadcast %cst_12 : f32 to vector<8x128xf32>
    %18 = arith.cmpf ogt, %16, %17 : vector<8x128xf32>
    %cst_13 = arith.constant 0.00999999977 : f32
    %19 = vector.broadcast %cst_13 : f32 to vector<8x128xf32>
    %20 = arith.mulf %19, %16 : vector<8x128xf32>
    %21 = arith.select %18, %16, %20 : vector<8x128xi1>, vector<8x128xf32>
    %22 = arith.truncf %21 : vector<8x128xf32> to vector<8x128xbf16>
    %c0_14 = arith.constant 0 : index
    %c0_15 = arith.constant 0 : index
    %23 = vector.load %arg6[%c0_14, %c0_15] : memref<128x128xbf16, #tpu.memory_space<vmem>>, vector<128x128xbf16>
    %cst_16 = arith.constant dense<0.000000e+00> : vector<8x128xf32>
    %24 = tpu.matmul %22, %23, %cst_16 {dimension_numbers = #tpu.dot_dimension_numbers<[1], [0], [0], [1], [0, 0, 1, 1], [], []>} : vector<8x128xbf16>, vector<128x128xbf16>, vector<8x128xf32> -> vector<8x128xf32>
    %c0_17 = arith.constant 0 : index
    %c0_18 = arith.constant 0 : index
    %25 = vector.load %arg7[%c0_17, %c0_18] : memref<1x128xf32, #tpu.memory_space<vmem>>, vector<1x128xf32>
    %26 = vector.broadcast %25 : vector<1x128xf32> to vector<8x128xf32>
    %27 = arith.addf %24, %26 : vector<8x128xf32>
    %cst_19 = arith.constant 0.000000e+00 : f32
    %28 = vector.broadcast %cst_19 : f32 to vector<8x128xf32>
    %29 = arith.cmpf ogt, %27, %28 : vector<8x128xf32>
    %cst_20 = arith.constant 0.00999999977 : f32
    %30 = vector.broadcast %cst_20 : f32 to vector<8x128xf32>
    %31 = arith.mulf %30, %27 : vector<8x128xf32>
    %32 = arith.select %29, %27, %31 : vector<8x128xi1>, vector<8x128xf32>
    %33 = arith.truncf %32 : vector<8x128xf32> to vector<8x128xbf16>
    %c0_21 = arith.constant 0 : index
    %c0_22 = arith.constant 0 : index
    %34 = vector.load %arg8[%c0_21, %c0_22] : memref<128x512xbf16, #tpu.memory_space<vmem>>, vector<128x512xbf16>
    %cst_23 = arith.constant dense<0.000000e+00> : vector<8x512xf32>
    %35 = tpu.matmul %33, %34, %cst_23 {dimension_numbers = #tpu.dot_dimension_numbers<[1], [0], [0], [1], [0, 0, 1, 1], [], []>} : vector<8x128xbf16>, vector<128x512xbf16>, vector<8x512xf32> -> vector<8x512xf32>
    %c0_24 = arith.constant 0 : index
    %c0_25 = arith.constant 0 : index
    %36 = vector.load %arg9[%c0_24, %c0_25] : memref<1x512xf32, #tpu.memory_space<vmem>>, vector<1x512xf32>
    %37 = vector.broadcast %36 : vector<1x512xf32> to vector<8x512xf32>
    %38 = arith.addf %35, %37 : vector<8x512xf32>
    %39 = vector.extract_strided_slice %38 {offsets = [0, 0], sizes = [8, 128], strides = [1, 1]} : vector<8x512xf32> to vector<8x128xf32>
    %cst_26 = arith.constant dense<0xFF800000> : vector<8xf32>
    %40 = vector.multi_reduction <maximumf>, %39, %cst_26 [1] : vector<8x128xf32> to vector<8xf32>
    %41 = vector.shape_cast %40 : vector<8xf32> to vector<8x1xf32>
    %42 = vector.broadcast %41 : vector<8x1xf32> to vector<8x128xf32>
    %43 = arith.subf %39, %42 : vector<8x128xf32>
    %44 = math.exp %43 : vector<8x128xf32>
    %cst_27 = arith.constant dense<0.000000e+00> : vector<8xf32>
    %45 = vector.multi_reduction <add>, %44, %cst_27 [1] : vector<8x128xf32> to vector<8xf32>
    %46 = vector.shape_cast %45 : vector<8xf32> to vector<8x1xf32>
    %cst_28 = arith.constant 1.000000e+00 : f32
    %47 = vector.broadcast %cst_28 : f32 to vector<8x1xf32>
    %48 = arith.divf %47, %46 : vector<8x1xf32>
    %49 = vector.broadcast %48 : vector<8x1xf32> to vector<8x128xf32>
    %50 = arith.mulf %44, %49 : vector<8x128xf32>
    %51 = vector.extract_strided_slice %38 {offsets = [0, 128], sizes = [8, 128], strides = [1, 1]} : vector<8x512xf32> to vector<8x128xf32>
    %cst_29 = arith.constant dense<0xFF800000> : vector<8xf32>
    %52 = vector.multi_reduction <maximumf>, %51, %cst_29 [1] : vector<8x128xf32> to vector<8xf32>
    %53 = vector.shape_cast %52 : vector<8xf32> to vector<8x1xf32>
    %54 = vector.broadcast %53 : vector<8x1xf32> to vector<8x128xf32>
    %55 = arith.subf %51, %54 : vector<8x128xf32>
    %56 = math.exp %55 : vector<8x128xf32>
    %cst_30 = arith.constant dense<0.000000e+00> : vector<8xf32>
    %57 = vector.multi_reduction <add>, %56, %cst_30 [1] : vector<8x128xf32> to vector<8xf32>
    %58 = vector.shape_cast %57 : vector<8xf32> to vector<8x1xf32>
    %cst_31 = arith.constant 1.000000e+00 : f32
    %59 = vector.broadcast %cst_31 : f32 to vector<8x1xf32>
    %60 = arith.divf %59, %58 : vector<8x1xf32>
    %61 = vector.broadcast %60 : vector<8x1xf32> to vector<8x128xf32>
    %62 = arith.mulf %56, %61 : vector<8x128xf32>
    %c64_i32 = arith.constant 64 : i32
    %63 = tpu.dynamic_rotate %62 by %c64_i32 dim 1 : vector<8x128xf32>, i32 -> vector<8x128xf32>
    %64 = arith.addf %50, %63 : vector<8x128xf32>
    %c0_32 = arith.constant 0 : index
    %c0_33 = arith.constant 0 : index
    %65 = vector.load %arg10[%c0_32, %c0_33] : memref<8x256xf32, #tpu.memory_space<vmem>>, vector<8x128xf32>
    tpu.vector_store %arg10[%c0_32, %c0_33], %64 {strides = array<i32>} : memref<8x256xf32, #tpu.memory_space<vmem>>, vector<8x128xf32>,
    %66 = vector.extract_strided_slice %38 {offsets = [0, 256], sizes = [8, 128], strides = [1, 1]} : vector<8x512xf32> to vector<8x128xf32>
    %cst_34 = arith.constant dense<0xFF800000> : vector<8xf32>
    %67 = vector.multi_reduction <maximumf>, %66, %cst_34 [1] : vector<8x128xf32> to vector<8xf32>
    %68 = vector.shape_cast %67 : vector<8xf32> to vector<8x1xf32>
    %69 = vector.broadcast %68 : vector<8x1xf32> to vector<8x128xf32>
    %70 = arith.subf %66, %69 : vector<8x128xf32>
    %71 = math.exp %70 : vector<8x128xf32>
    %cst_35 = arith.constant dense<0.000000e+00> : vector<8xf32>
    %72 = vector.multi_reduction <add>, %71, %cst_35 [1] : vector<8x128xf32> to vector<8xf32>
    %73 = vector.shape_cast %72 : vector<8xf32> to vector<8x1xf32>
    %cst_36 = arith.constant 1.000000e+00 : f32
    %74 = vector.broadcast %cst_36 : f32 to vector<8x1xf32>
    %75 = arith.divf %74, %73 : vector<8x1xf32>
    %76 = vector.broadcast %75 : vector<8x1xf32> to vector<8x128xf32>
    %77 = arith.mulf %71, %76 : vector<8x128xf32>
    %78 = vector.extract_strided_slice %38 {offsets = [0, 384], sizes = [8, 128], strides = [1, 1]} : vector<8x512xf32> to vector<8x128xf32>
    %cst_37 = arith.constant dense<0xFF800000> : vector<8xf32>
    %79 = vector.multi_reduction <maximumf>, %78, %cst_37 [1] : vector<8x128xf32> to vector<8xf32>
    %80 = vector.shape_cast %79 : vector<8xf32> to vector<8x1xf32>
    %81 = vector.broadcast %80 : vector<8x1xf32> to vector<8x128xf32>
    %82 = arith.subf %78, %81 : vector<8x128xf32>
    %83 = math.exp %82 : vector<8x128xf32>
    %cst_38 = arith.constant dense<0.000000e+00> : vector<8xf32>
    %84 = vector.multi_reduction <add>, %83, %cst_38 [1] : vector<8x128xf32> to vector<8xf32>
    %85 = vector.shape_cast %84 : vector<8xf32> to vector<8x1xf32>
    %cst_39 = arith.constant 1.000000e+00 : f32
    %86 = vector.broadcast %cst_39 : f32 to vector<8x1xf32>
    %87 = arith.divf %86, %85 : vector<8x1xf32>
    %88 = vector.broadcast %87 : vector<8x1xf32> to vector<8x128xf32>
    %89 = arith.mulf %83, %88 : vector<8x128xf32>
    %c64_i32_40 = arith.constant 64 : i32
    %90 = tpu.dynamic_rotate %89 by %c64_i32_40 dim 1 : vector<8x128xf32>, i32 -> vector<8x128xf32>
    %91 = arith.addf %77, %90 : vector<8x128xf32>
    %c0_41 = arith.constant 0 : index
    %c128 = arith.constant 128 : index
    %92 = vector.load %arg10[%c0_41, %c128] : memref<8x256xf32, #tpu.memory_space<vmem>>, vector<8x128xf32>
    tpu.vector_store %arg10[%c0_41, %c128], %91 {strides = array<i32>} : memref<8x256xf32, #tpu.memory_space<vmem>>, vector<8x128xf32>,
    return
  }
  func.func @transform_0(%arg0: i32) -> (i32, i32) {
    %c0_i32 = arith.constant 0 : i32
    %c0_i32_0 = arith.constant 0 : i32
    return %arg0, %c0_i32 : i32, i32
  }
  func.func @transform_1(%arg0: i32) -> (i32, i32) {
    %c0_i32 = arith.constant 0 : i32
    %c0_i32_0 = arith.constant 0 : i32
    %c0_i32_1 = arith.constant 0 : i32
    return %c0_i32, %c0_i32_0 : i32, i32
  }
  func.func @transform_2(%arg0: i32) -> (i32, i32) {
    %c0_i32 = arith.constant 0 : i32
    %c0_i32_0 = arith.constant 0 : i32
    %c0_i32_1 = arith.constant 0 : i32
    return %c0_i32, %c0_i32_0 : i32, i32
  }
  func.func @transform_3(%arg0: i32) -> (i32, i32) {
    %c0_i32 = arith.constant 0 : i32
    %c0_i32_0 = arith.constant 0 : i32
    %c0_i32_1 = arith.constant 0 : i32
    return %c0_i32, %c0_i32_0 : i32, i32
  }
  func.func @transform_4(%arg0: i32) -> (i32, i32) {
    %c0_i32 = arith.constant 0 : i32
    %c0_i32_0 = arith.constant 0 : i32
    %c0_i32_1 = arith.constant 0 : i32
    return %c0_i32, %c0_i32_0 : i32, i32
  }
  func.func @transform_5(%arg0: i32) -> (i32, i32) {
    %c0_i32 = arith.constant 0 : i32
    %c0_i32_0 = arith.constant 0 : i32
    %c0_i32_1 = arith.constant 0 : i32
    return %c0_i32, %c0_i32_0 : i32, i32
  }
  func.func @transform_6(%arg0: i32) -> (i32, i32) {
    %c0_i32 = arith.constant 0 : i32
    %c0_i32_0 = arith.constant 0 : i32
    %c0_i32_1 = arith.constant 0 : i32
    return %c0_i32, %c0_i32_0 : i32, i32
  }
  func.func @transform_7(%arg0: i32) -> (i32, i32) {
    %c0_i32 = arith.constant 0 : i32
    %c0_i32_0 = arith.constant 0 : i32
    %c0_i32_1 = arith.constant 0 : i32
    return %c0_i32, %c0_i32_0 : i32, i32
  }
  func.func @transform_8(%arg0: i32) -> (i32, i32) {
    %c0_i32 = arith.constant 0 : i32
    %c0_i32_0 = arith.constant 0 : i32
    %c0_i32_1 = arith.constant 0 : i32
    return %c0_i32, %c0_i32_0 : i32, i32
  }
  func.func @transform_9(%arg0: i32) -> (i32, i32) {
    %c0_i32 = arith.constant 0 : i32
    %c0_i32_0 = arith.constant 0 : i32
    return %arg0, %c0_i32 : i32, i32
  }
}

</mosaic_0001>

<llo_original>
// kernel: tpu_custom_call.1
$region0: #{tpu_custom_call.1}
  #allocation0 [shape = 'u32[]', space=smem, size = 0x4, offset = 0x4, fixed_abs, tag = 'smem constant byte address 0x4 - core index']
  #allocation1 [shape = 'u32[72,128]{1,0:T(1,128)}', space=vmem, size = 0x9000, scoped, tag = 'internal scratch']
  %s0 = inlined_call_operand.hbm [shape: bf16[8,32], index: 0, kind: input, shape index: {}]
  %s1 = inlined_call_operand.hbm [shape: bf16[32,128], index: 1, kind: input, shape index: {}]
  %s2 = inlined_call_operand.vmem [shape: f32[1,128], index: 2, kind: input, shape index: {}]
  %s3 = inlined_call_operand.hbm [shape: bf16[128,128], index: 3, kind: input, shape index: {}]
  %s4 = inlined_call_operand.vmem [shape: f32[1,128], index: 4, kind: input, shape index: {}]
  %s5 = inlined_call_operand.hbm [shape: bf16[128,128], index: 5, kind: input, shape index: {}]
  %s6 = inlined_call_operand.vmem [shape: f32[1,128], index: 6, kind: input, shape index: {}]
  %s7 = inlined_call_operand.hbm [shape: bf16[128,512], index: 7, kind: input, shape index: {}]
  %s8 = inlined_call_operand.vmem [shape: f32[1,512], index: 8, kind: input, shape index: {}]
  %s9 = inlined_call_operand.hbm [shape: f32[8,256], index: 9, kind: output, shape index: {}]
  %s10 = sld [smem:[#allocation0]]
  $region66: #{tpu_custom_call.1} parent=0
    _
  %s12 = ssub.s32 1, %s10
  %s13 = scalar_select 0, %s12, %s10
  $region1: #{tpu_custom_call.1} parent=0
    #allocation2 [shape = 'u8[2048]{0}', space=vmem, size = 0x800, scoped, tag = 'input window, operand 0, single buffered']
    #allocation3 [shape = 's32[1]{0}', space=sflag, size = 0x4, scoped, tag = 'scoped memory for tpu_custom_call.1']
    #allocation4 [shape = 's32[1]{0}', space=sflag, size = 0x4, scoped, tag = 'scoped memory for tpu_custom_call.1']
    #allocation5 [shape = 'u8[8192]{0}', space=vmem, size = 0x2000, scoped, tag = 'input window, operand 1, single buffered']
    #allocation6 [shape = 's32[1]{0}', space=sflag, size = 0x4, scoped, tag = 'scoped memory for tpu_custom_call.1']
    #allocation7 [shape = 'u8[32768]{0}', space=vmem, size = 0x8000, scoped, tag = 'input window, operand 3, single buffered']
    #allocation8 [shape = 'u8[32768]{0}', space=vmem, size = 0x8000, scoped, tag = 'input window, operand 5, single buffered']
    #allocation9 [shape = 's32[1]{0}', space=sflag, size = 0x4, scoped, tag = 'scoped memory for tpu_custom_call.1']
    #allocation10 [shape = 'u8[131072]{0}', space=vmem, size = 0x20000, scoped, tag = 'input window, operand 7, single buffered']
    #allocation11 [shape = 'u8[8192]{0}', space=vmem, size = 0x2000, scoped, tag = 'output window, operand 0, single buffered']
    %14 = vsyncpa [#allocation3], 0
    %15 = vsyncpa [#allocation6], 0
    %16 = vsyncpa [#allocation9], 0
    %17 = vsyncpa [#allocation4], 0
    // Predicated region
    $region2: #{tpu_custom_call.1} parent=1 // pred_check
      _
    $region3: #{tpu_custom_call.1} parent=1 // pred_check_branch
      %19 = sbr.rel (0) target = $region5
    $region4: #{tpu_custom_call.1} parent=1 // pred_region
      %21 = vsyncadd [#allocation3], 0
      %s23 = sshll.u32 %s0, 4
      %s24 = int_to_ptr.hbm [resolvable:$true] %s23
      %s25 = sshll.u32 [#allocation2], 4
      %s26 = int_to_ptr.vmem [resolvable:$true] %s25
      %28 = dma.hbm_to_vmem [thread:$0]  %s24, 64, %s26, [#allocation3]
    $region5: #{tpu_custom_call.1} parent=1 // pred_fallthru
      _
    // Predicated region
    $region6: #{tpu_custom_call.1} parent=1 // pred_check
      _
    $region7: #{tpu_custom_call.1} parent=1 // pred_check_branch
      %30 = sbr.rel (0) target = $region9
    $region8: #{tpu_custom_call.1} parent=1 // pred_region
      %32 = vsyncadd [#allocation6], 0
      %s33 = sshll.u32 %s1, 4
      %s34 = int_to_ptr.hbm [resolvable:$true] %s33
      %s35 = sshll.u32 [#allocation5], 4
      %s36 = int_to_ptr.vmem [resolvable:$true] %s35
      %41 = dma.hbm_to_vmem [thread:$0]  %s34, 256, %s36, [#allocation6], 64, 64, 4
    $region9: #{tpu_custom_call.1} parent=1 // pred_fallthru
      _
    // Predicated region
    $region10: #{tpu_custom_call.1} parent=1 // pred_check
      _
    $region11: #{tpu_custom_call.1} parent=1 // pred_check_branch
      %43 = sbr.rel (0) target = $region13
    $region12: #{tpu_custom_call.1} parent=1 // pred_region
      _
    $region13: #{tpu_custom_call.1} parent=1 // pred_fallthru
      _
    // Predicated region
    $region14: #{tpu_custom_call.1} parent=1 // pred_check
      _
    $region15: #{tpu_custom_call.1} parent=1 // pred_check_branch
      %45 = sbr.rel (0) target = $region17
    $region16: #{tpu_custom_call.1} parent=1 // pred_region
      %47 = vsyncadd [#allocation6], 0
      %s48 = sshll.u32 %s3, 4
      %s49 = int_to_ptr.hbm [resolvable:$true] %s48
      %s50 = sshll.u32 [#allocation7], 4
      %s51 = int_to_ptr.vmem [resolvable:$true] %s50
      %56 = dma.hbm_to_vmem [thread:$0]  %s49, 1024, %s51, [#allocation6], 64, 64, 4
    $region17: #{tpu_custom_call.1} parent=1 // pred_fallthru
      _
    // Predicated region
    $region18: #{tpu_custom_call.1} parent=1 // pred_check
      _
    $region19: #{tpu_custom_call.1} parent=1 // pred_check_branch
      %58 = sbr.rel (0) target = $region21
    $region20: #{tpu_custom_call.1} parent=1 // pred_region
      _
    $region21: #{tpu_custom_call.1} parent=1 // pred_fallthru
      _
    // Predicated region
    $region22: #{tpu_custom_call.1} parent=1 // pred_check
      _
    $region23: #{tpu_custom_call.1} parent=1 // pred_check_branch
      %60 = sbr.rel (0) target = $region25
    $region24: #{tpu_custom_call.1} parent=1 // pred_region
      %62 = vsyncadd [#allocation9], 0
      %s63 = sshll.u32 %s5, 4
      %s64 = int_to_ptr.hbm [resolvable:$true] %s63
      %s65 = sshll.u32 [#allocation8], 4
      %s66 = int_to_ptr.vmem [resolvable:$true] %s65
      %71 = dma.hbm_to_vmem [thread:$0]  %s64, 1024, %s66, [#allocation9], 64, 64, 4
    $region25: #{tpu_custom_call.1} parent=1 // pred_fallthru
      _
    // Predicated region
    $region26: #{tpu_custom_call.1} parent=1 // pred_check
      _
    $region27: #{tpu_custom_call.1} parent=1 // pred_check_branch
      %73 = sbr.rel (0) target = $region29
    $region28: #{tpu_custom_call.1} parent=1 // pred_region
      _
    $region29: #{tpu_custom_call.1} parent=1 // pred_fallthru
      _
    // Predicated region
    $region30: #{tpu_custom_call.1} parent=1 // pred_check
      _
    $region31: #{tpu_custom_call.1} parent=1 // pred_check_branch
      %75 = sbr.rel (0) target = $region33
    $region32: #{tpu_custom_call.1} parent=1 // pred_region
      %77 = vsyncadd [#allocation9], 0
      %s78 = sshll.u32 %s7, 4
      %s79 = int_to_ptr.hbm [resolvable:$true] %s78
      %s80 = sshll.u32 [#allocation10], 4
      %s81 = int_to_ptr.vmem [resolvable:$true] %s80
      %86 = dma.hbm_to_vmem [thread:$0]  %s79, 4096, %s81, [#allocation9], 256, 256, 16
    $region33: #{tpu_custom_call.1} parent=1 // pred_fallthru
      _
    // Predicated region
    $region34: #{tpu_custom_call.1} parent=1 // pred_check
      _
    $region35: #{tpu_custom_call.1} parent=1 // pred_check_branch
      %88 = sbr.rel (0) target = $region37
    $region36: #{tpu_custom_call.1} parent=1 // pred_region
      _
    $region37: #{tpu_custom_call.1} parent=1 // pred_fallthru
      _
    // Predicated region
    $region38: #{tpu_custom_call.1} parent=1 // pred_check
      _
    $region39: #{tpu_custom_call.1} parent=1 // pred_check_branch
      %90 = sbr.rel (0) target = $region41
    $region40: #{tpu_custom_call.1} parent=1 // pred_region
      %92 = dma.done [#allocation3], 64
    $region41: #{tpu_custom_call.1} parent=1 // pred_fallthru
      _
    // Predicated region
    $region42: #{tpu_custom_call.1} parent=1 // pred_check
      _
    $region43: #{tpu_custom_call.1} parent=1 // pred_check_branch
      %94 = sbr.rel (0) target = $region45
    $region44: #{tpu_custom_call.1} parent=1 // pred_region
      %96 = dma.done [#allocation6], 256
    $region45: #{tpu_custom_call.1} parent=1 // pred_fallthru
      _
    // Predicated region
    $region46: #{tpu_custom_call.1} parent=1 // pred_check
      _
    $region47: #{tpu_custom_call.1} parent=1 // pred_check_branch
      %98 = sbr.rel (0) target = $region49
    $region48: #{tpu_custom_call.1} parent=1 // pred_region
      %100 = dma.done [#allocation6], 1024
    $region49: #{tpu_custom_call.1} parent=1 // pred_fallthru
      _
    // Predicated region
    $region50: #{tpu_custom_call.1} parent=1 // pred_check
      _
    $region51: #{tpu_custom_call.1} parent=1 // pred_check_branch
      %102 = sbr.rel (0) target = $region53
    $region52: #{tpu_custom_call.1} parent=1 // pred_region
      %104 = dma.done [#allocation9], 1024
    $region53: #{tpu_custom_call.1} parent=1 // pred_fallthru
      _
    // Predicated region
    $region54: #{tpu_custom_call.1} parent=1 // pred_check
      _
    $region55: #{tpu_custom_call.1} parent=1 // pred_check_branch
      %106 = sbr.rel (0) target = $region57
    $region56: #{tpu_custom_call.1} parent=1 // pred_region
      %108 = dma.done [#allocation9], 4096
    $region57: #{tpu_custom_call.1} parent=1 // pred_fallthru
      _
    %v110 = vld [vmem:[#allocation2] sm:$0xf]
    %v111 = vld [vmem:[#allocation5] sm:$0xf]
    %v112 = vld [vmem:[#allocation5 + $0x4] sm:$0xf]
    %v113 = vld [vmem:[#allocation5 + $0x8] sm:$0xf]
    %v114 = vld [vmem:[#allocation5 + $0xc] sm:$0xf]
    %v115 = vld [vmem:[%s2] sm:$0x1]
    %v117 = vperm.slane %v115, 0
    %v123 = vunpack.c.l.b16 %v111
    %v124 = vunpack.c.l.b16 %v112
    %v125 = vunpack.c.l.b16 %v113
    %v126 = vunpack.c.l.b16 %v114
    %v127 = vpack.c.b16 %v124, %v123
    %v128 = vpack.c.b16 %v126, %v125
    %vm131 = vcmask 261120
    %v133 = vsel %vm131, %v110, 0
    %135 = vmatpush.bf16.msra.mxu0 0
    %136 = vmatpush.bf16.msra.mxu0 0
    %137 = vmatpush.bf16.msra.mxu0 0
    %138 = vmatpush.bf16.msra.mxu0 0
    %139 = vmatpush.bf16.msra.mxu0 0
    %140 = vmatpush.bf16.msra.mxu0 0
    %141 = vmatpush.bf16.msra.mxu0 %v128
    %142 = vmatpush.bf16.msra.mxu0 %v127
    %143 = vmatmul.bf16.gmra.mxu0 %v133
    %v144 = vpop.f32.mrf.mxu0
    %v145 = vadd.f32 %v117, %v144
    %v146 = vpop.f32.mrf.mxu0
    %147 = vdwg.mxu0
    %vm148 = vcmp.gt.f32.partialorder %v145, 0.0
    %v149 = vmul.f32 %v145, 0.01
    %v150 = vsel %vm148, %v145, %v149
    %v151 = vpack.c.bf16 %v150, %v150
    %v152 = vld [vmem:[#allocation7] sm:$0xf]
    %v153 = vld [vmem:[#allocation7 + $0x4] sm:$0xf]
    %v154 = vld [vmem:[#allocation7 + $0x8] sm:$0xf]
    %v155 = vld [vmem:[#allocation7 + $0xc] sm:$0xf]
    %v156 = vld [vmem:[#allocation7 + $0x10] sm:$0xf]
    %v157 = vld [vmem:[#allocation7 + $0x14] sm:$0xf]
    %v158 = vld [vmem:[#allocation7 + $0x18] sm:$0xf]
    %v159 = vld [vmem:[#allocation7 + $0x1c] sm:$0xf]
    %v160 = vld [vmem:[#allocation7 + $0x20] sm:$0xf]
    %v161 = vld [vmem:[#allocation7 + $0x24] sm:$0xf]
    %v162 = vld [vmem:[#allocation7 + $0x28] sm:$0xf]
    %v163 = vld [vmem:[#allocation7 + $0x2c] sm:$0xf]
    %v164 = vld [vmem:[#allocation7 + $0x30] sm:$0xf]
    %v165 = vld [vmem:[#allocation7 + $0x34] sm:$0xf]
    %v166 = vld [vmem:[#allocation7 + $0x38] sm:$0xf]
    %v167 = vld [vmem:[#allocation7 + $0x3c] sm:$0xf]
    %v168 = vld [vmem:[%s4] sm:$0x1]
    %v170 = vperm.slane %v168, 0
    %v188 = vunpack.c.l.b16 %v152
    %v189 = vunpack.c.l.b16 %v153
    %v190 = vunpack.c.l.b16 %v154
    %v191 = vunpack.c.l.b16 %v155
    %v192 = vunpack.c.l.b16 %v156
    %v193 = vunpack.c.l.b16 %v157
    %v194 = vunpack.c.l.b16 %v158
    %v195 = vunpack.c.l.b16 %v159
    %v196 = vunpack.c.l.b16 %v160
    %v197 = vunpack.c.l.b16 %v161
    %v198 = vunpack.c.l.b16 %v162
    %v199 = vunpack.c.l.b16 %v163
    %v200 = vunpack.c.l.b16 %v164
    %v201 = vunpack.c.l.b16 %v165
    %v202 = vunpack.c.l.b16 %v166
    %v203 = vunpack.c.l.b16 %v167
    %v204 = vpack.c.b16 %v189, %v188
    %v205 = vpack.c.b16 %v191, %v190
    %v206 = vpack.c.b16 %v193, %v192
    %v207 = vpack.c.b16 %v195, %v194
    %v208 = vpack.c.b16 %v197, %v196
    %v209 = vpack.c.b16 %v199, %v198
    %v210 = vpack.c.b16 %v201, %v200
    %v211 = vpack.c.b16 %v203, %v202
    %220 = vmatpush.bf16.msra.mxu0 %v211
    %221 = vmatpush.bf16.msra.mxu0 %v210
    %222 = vmatpush.bf16.msra.mxu0 %v209
    %223 = vmatpush.bf16.msra.mxu0 %v208
    %224 = vmatpush.bf16.msra.mxu0 %v207
    %225 = vmatpush.bf16.msra.mxu0 %v206
    %226 = vmatpush.bf16.msra.mxu0 %v205
    %227 = vmatpush.bf16.msra.mxu0 %v204
    %228 = vmatmul.bf16.gmra.mxu0 %v151
    %v229 = vpop.f32.mrf.mxu0
    %v230 = vadd.f32 %v170, %v229
    %v231 = vpop.f32.mrf.mxu0
    %232 = vdwg.mxu0
    %vm233 = vcmp.gt.f32.partialorder %v230, 0.0
    %v234 = vmul.f32 %v230, 0.01
    %v235 = vsel %vm233, %v230, %v234
    %v236 = vpack.c.bf16 %v235, %v235
    %v237 = vld [vmem:[#allocation8] sm:$0xf]
    %v238 = vld [vmem:[#allocation8 + $0x4] sm:$0xf]
    %v239 = vld [vmem:[#allocation8 + $0x8] sm:$0xf]
    %v240 = vld [vmem:[#allocation8 + $0xc] sm:$0xf]
    %v241 = vld [vmem:[#allocation8 + $0x10] sm:$0xf]
    %v242 = vld [vmem:[#allocation8 + $0x14] sm:$0xf]
    %v243 = vld [vmem:[#allocation8 + $0x18] sm:$0xf]
    %v244 = vld [vmem:[#allocation8 + $0x1c] sm:$0xf]
    %v245 = vld [vmem:[#allocation8 + $0x20] sm:$0xf]
    %v246 = vld [vmem:[#allocation8 + $0x24] sm:$0xf]
    %v247 = vld [vmem:[#allocation8 + $0x28] sm:$0xf]
    %v248 = vld [vmem:[#allocation8 + $0x2c] sm:$0xf]
    %v249 = vld [vmem:[#allocation8 + $0x30] sm:$0xf]
    %v250 = vld [vmem:[#allocation8 + $0x34] sm:$0xf]
    %v251 = vld [vmem:[#allocation8 + $0x38] sm:$0xf]
    %v252 = vld [vmem:[#allocation8 + $0x3c] sm:$0xf]
    %v253 = vld [vmem:[%s6] sm:$0x1]
    %v255 = vperm.slane %v253, 0
    %v273 = vunpack.c.l.b16 %v237
    %v274 = vunpack.c.l.b16 %v238
    %v275 = vunpack.c.l.b16 %v239
    %v276 = vunpack.c.l.b16 %v240
    %v277 = vunpack.c.l.b16 %v241
    %v278 = vunpack.c.l.b16 %v242
    %v279 = vunpack.c.l.b16 %v243
    %v280 = vunpack.c.l.b16 %v244
    %v281 = vunpack.c.l.b16 %v245
    %v282 = vunpack.c.l.b16 %v246
    %v283 = vunpack.c.l.b16 %v247
    %v284 = vunpack.c.l.b16 %v248
    %v285 = vunpack.c.l.b16 %v249
    %v286 = vunpack.c.l.b16 %v250
    %v287 = vunpack.c.l.b16 %v251
    %v288 = vunpack.c.l.b16 %v252
    %v289 = vpack.c.b16 %v274, %v273
    %v290 = vpack.c.b16 %v276, %v275
    %v291 = vpack.c.b16 %v278, %v277
    %v292 = vpack.c.b16 %v280, %v279
    %v293 = vpack.c.b16 %v282, %v281
    %v294 = vpack.c.b16 %v284, %v283
    %v295 = vpack.c.b16 %v286, %v285
    %v296 = vpack.c.b16 %v288, %v287
    %305 = vmatpush.bf16.msra.mxu0 %v296
    %306 = vmatpush.bf16.msra.mxu0 %v295
    %307 = vmatpush.bf16.msra.mxu0 %v294
    %308 = vmatpush.bf16.msra.mxu0 %v293
    %309 = vmatpush.bf16.msra.mxu0 %v292
    %310 = vmatpush.bf16.msra.mxu0 %v291
    %311 = vmatpush.bf16.msra.mxu0 %v290
    %312 = vmatpush.bf16.msra.mxu0 %v289
    %313 = vmatmul.bf16.gmra.mxu0 %v236
    %v314 = vpop.f32.mrf.mxu0
    %v315 = vadd.f32 %v255, %v314
    %v316 = vpop.f32.mrf.mxu0
    %317 = vdwg.mxu0
    %vm318 = vcmp.gt.f32.partialorder %v315, 0.0
    %v319 = vmul.f32 %v315, 0.01
    %v320 = vsel %vm318, %v315, %v319
    %v321 = vpack.c.bf16 %v320, %v320
    %v322 = vld [vmem:[#allocation10] sm:$0xff]
    %v323 = vld [vmem:[#allocation10 + $0x8] sm:$0xff]
    %v324 = vld [vmem:[#allocation10 + $0x10] sm:$0xff]
    %v325 = vld [vmem:[#allocation10 + $0x18] sm:$0xff]
    %v326 = vld [vmem:[#allocation10 + $0x20] sm:$0xff]
    %v327 = vld [vmem:[#allocation10 + $0x28] sm:$0xff]
    %v328 = vld [vmem:[#allocation10 + $0x30] sm:$0xff]
    %v329 = vld [vmem:[#allocation10 + $0x38] sm:$0xff]
    %v330 = vld [vmem:[#allocation10 + $0x40] sm:$0xff]
    %v331 = vld [vmem:[#allocation10 + $0x48] sm:$0xff]
    %v332 = vld [vmem:[#allocation10 + $0x50] sm:$0xff]
    %v333 = vld [vmem:[#allocation10 + $0x58] sm:$0xff]
    %v334 = vld [vmem:[#allocation10 + $0x60] sm:$0xff]
    %v335 = vld [vmem:[#allocation10 + $0x68] sm:$0xff]
    %v336 = vld [vmem:[#allocation10 + $0x70] sm:$0xff]
    %v337 = vld [vmem:[#allocation10 + $0x78] sm:$0xff]
    %v338 = vld [vmem:[#allocation10 + $0x80] sm:$0xff]
    %v339 = vld [vmem:[#allocation10 + $0x88] sm:$0xff]
    %v340 = vld [vmem:[#allocation10 + $0x90] sm:$0xff]
    %v341 = vld [vmem:[#allocation10 + $0x98] sm:$0xff]
    %v342 = vld [vmem:[#allocation10 + $0xa0] sm:$0xff]
    %v343 = vld [vmem:[#allocation10 + $0xa8] sm:$0xff]
    %v344 = vld [vmem:[#allocation10 + $0xb0] sm:$0xff]
    %v345 = vld [vmem:[#allocation10 + $0xb8] sm:$0xff]
    %v346 = vld [vmem:[#allocation10 + $0xc0] sm:$0xff]
    %v347 = vld [vmem:[#allocation10 + $0xc8] sm:$0xff]
    %v348 = vld [vmem:[#allocation10 + $0xd0] sm:$0xff]
    %v349 = vld [vmem:[#allocation10 + $0xd8] sm:$0xff]
    %v350 = vld [vmem:[#allocation10 + $0xe0] sm:$0xff]
    %v351 = vld [vmem:[#allocation10 + $0xe8] sm:$0xff]
    %v352 = vld [vmem:[#allocation10 + $0xf0] sm:$0xff]
    %v353 = vld [vmem:[#allocation10 + $0xf8] sm:$0xff]
    %v354 = vld [vmem:[%s8] sm:$0xf]
    %v356 = vperm.slane %v354, 0
    %v357 = vperm.slane %v354, 1
    %v358 = vperm.slane %v354, 2
    %v359 = vperm.slane %v354, 3
    %v396 = vunpack.c.l.b16 %v322
    %v397 = vunpack.c.h.b16 %v322
    %v398 = vunpack.c.l.b16 %v323
    %v399 = vunpack.c.h.b16 %v323
    %v400 = vunpack.c.l.b16 %v324
    %v401 = vunpack.c.h.b16 %v324
    %v402 = vunpack.c.l.b16 %v325
    %v403 = vunpack.c.h.b16 %v325
    %v404 = vunpack.c.l.b16 %v326
    %v405 = vunpack.c.h.b16 %v326
    %v406 = vunpack.c.l.b16 %v327
    %v407 = vunpack.c.h.b16 %v327
    %v408 = vunpack.c.l.b16 %v328
    %v409 = vunpack.c.h.b16 %v328
    %v410 = vunpack.c.l.b16 %v329
    %v411 = vunpack.c.h.b16 %v329
    %v412 = vunpack.c.l.b16 %v330
    %v413 = vunpack.c.h.b16 %v330
    %v414 = vunpack.c.l.b16 %v331
    %v415 = vunpack.c.h.b16 %v331
    %v416 = vunpack.c.l.b16 %v332
    %v417 = vunpack.c.h.b16 %v332
    %v418 = vunpack.c.l.b16 %v333
    %v419 = vunpack.c.h.b16 %v333
    %v420 = vunpack.c.l.b16 %v334
    %v421 = vunpack.c.h.b16 %v334
    %v422 = vunpack.c.l.b16 %v335
    %v423 = vunpack.c.h.b16 %v335
    %v424 = vunpack.c.l.b16 %v336
    %v425 = vunpack.c.h.b16 %v336
    %v426 = vunpack.c.l.b16 %v337
    %v427 = vunpack.c.h.b16 %v337
    %v428 = vunpack.c.l.b16 %v338
    %v429 = vunpack.c.h.b16 %v338
    %v430 = vunpack.c.l.b16 %v339
    %v431 = vunpack.c.h.b16 %v339
    %v432 = vunpack.c.l.b16 %v340
    %v433 = vunpack.c.h.b16 %v340
    %v434 = vunpack.c.l.b16 %v341
    %v435 = vunpack.c.h.b16 %v341
    %v436 = vunpack.c.l.b16 %v342
    %v437 = vunpack.c.h.b16 %v342
    %v438 = vunpack.c.l.b16 %v343
    %v439 = vunpack.c.h.b16 %v343
    %v440 = vunpack.c.l.b16 %v344
    %v441 = vunpack.c.h.b16 %v344
    %v442 = vunpack.c.l.b16 %v345
    %v443 = vunpack.c.h.b16 %v345
    %v444 = vunpack.c.l.b16 %v346
    %v445 = vunpack.c.h.b16 %v346
    %v446 = vunpack.c.l.b16 %v347
    %v447 = vunpack.c.h.b16 %v347
    %v448 = vunpack.c.l.b16 %v348
    %v449 = vunpack.c.h.b16 %v348
    %v450 = vunpack.c.l.b16 %v349
    %v451 = vunpack.c.h.b16 %v349
    %v452 = vunpack.c.l.b16 %v350
    %v453 = vunpack.c.h.b16 %v350
    %v454 = vunpack.c.l.b16 %v351
    %v455 = vunpack.c.h.b16 %v351
    %v456 = vunpack.c.l.b16 %v352
    %v457 = vunpack.c.h.b16 %v352
    %v458 = vunpack.c.l.b16 %v353
    %v459 = vunpack.c.h.b16 %v353
    %v460 = vpack.c.b16 %v400, %v396
    %v461 = vpack.c.b16 %v401, %v397
    %v462 = vpack.c.b16 %v402, %v398
    %v463 = vpack.c.b16 %v403, %v399
    %v464 = vpack.c.b16 %v408, %v404
    %v465 = vpack.c.b16 %v409, %v405
    %v466 = vpack.c.b16 %v410, %v406
    %v467 = vpack.c.b16 %v411, %v407
    %v468 = vpack.c.b16 %v416, %v412
    %v469 = vpack.c.b16 %v417, %v413
    %v470 = vpack.c.b16 %v418, %v414
    %v471 = vpack.c.b16 %v419, %v415
    %v472 = vpack.c.b16 %v424, %v420
    %v473 = vpack.c.b16 %v425, %v421
    %v474 = vpack.c.b16 %v426, %v422
    %v475 = vpack.c.b16 %v427, %v423
    %v476 = vpack.c.b16 %v432, %v428
    %v477 = vpack.c.b16 %v433, %v429
    %v478 = vpack.c.b16 %v434, %v430
    %v479 = vpack.c.b16 %v435, %v431
    %v480 = vpack.c.b16 %v440, %v436
    %v481 = vpack.c.b16 %v441, %v437
    %v482 = vpack.c.b16 %v442, %v438
    %v483 = vpack.c.b16 %v443, %v439
    %v484 = vpack.c.b16 %v448, %v444
    %v485 = vpack.c.b16 %v449, %v445
    %v486 = vpack.c.b16 %v450, %v446
    %v487 = vpack.c.b16 %v451, %v447
    %v488 = vpack.c.b16 %v456, %v452
    %v489 = vpack.c.b16 %v457, %v453
    %v490 = vpack.c.b16 %v458, %v454
    %v491 = vpack.c.b16 %v459, %v455
    %524 = vmatpush.bf16.msra.mxu0 %v488
    %525 = vmatpush.bf16.msra.mxu0 %v484
    %526 = vmatpush.bf16.msra.mxu0 %v480
    %527 = vmatpush.bf16.msra.mxu0 %v476
    %528 = vmatpush.bf16.msra.mxu0 %v472
    %529 = vmatpush.bf16.msra.mxu0 %v468
    %530 = vmatpush.bf16.msra.mxu0 %v464
    %531 = vmatpush.bf16.msra.mxu0 %v460
    %532 = vmatmul.bf16.gmra.mxu0 %v321
    %v533 = vpop.f32.mrf.mxu0
    %v534 = vadd.f32 %v356, %v533
    %v535 = vpop.f32.mrf.mxu0
    %536 = vdwg.mxu0
    %537 = vmatpush.bf16.msra.mxu0 %v489
    %538 = vmatpush.bf16.msra.mxu0 %v485
    %539 = vmatpush.bf16.msra.mxu0 %v481
    %540 = vmatpush.bf16.msra.mxu0 %v477
    %541 = vmatpush.bf16.msra.mxu0 %v473
    %542 = vmatpush.bf16.msra.mxu0 %v469
    %543 = vmatpush.bf16.msra.mxu0 %v465
    %544 = vmatpush.bf16.msra.mxu0 %v461
    %545 = vmatmul.bf16.gmra.mxu0 %v321
    %v546 = vpop.f32.mrf.mxu0
    %v547 = vadd.f32 %v357, %v546
    %v548 = vpop.f32.mrf.mxu0
    %549 = vdwg.mxu0
    %550 = vmatpush.bf16.msra.mxu0 %v490
    %551 = vmatpush.bf16.msra.mxu0 %v486
    %552 = vmatpush.bf16.msra.mxu0 %v482
    %553 = vmatpush.bf16.msra.mxu0 %v478
    %554 = vmatpush.bf16.msra.mxu0 %v474
    %555 = vmatpush.bf16.msra.mxu0 %v470
    %556 = vmatpush.bf16.msra.mxu0 %v466
    %557 = vmatpush.bf16.msra.mxu0 %v462
    %558 = vmatmul.bf16.gmra.mxu0 %v321
    %v559 = vpop.f32.mrf.mxu0
    %v560 = vadd.f32 %v358, %v559
    %v561 = vpop.f32.mrf.mxu0
    %562 = vdwg.mxu0
    %563 = vmatpush.bf16.msra.mxu0 %v491
    %564 = vmatpush.bf16.msra.mxu0 %v487
    %565 = vmatpush.bf16.msra.mxu0 %v483
    %566 = vmatpush.bf16.msra.mxu0 %v479
    %567 = vmatpush.bf16.msra.mxu0 %v475
    %568 = vmatpush.bf16.msra.mxu0 %v471
    %569 = vmatpush.bf16.msra.mxu0 %v467
    %570 = vmatpush.bf16.msra.mxu0 %v463
    %571 = vmatmul.bf16.gmra.mxu0 %v321
    %v572 = vpop.f32.mrf.mxu0
    %v573 = vadd.f32 %v359, %v572
    %v574 = vpop.f32.mrf.mxu0
    %575 = vdwg.mxu0
    %576 = vmax.xlane.f32.xlu0 %v534
    %v577 = vpop.xlane.xlu0 %576
    %v578 = vsub.f32 %v534, %v577
    %v579 = vmul.f32 %v578, 1.442695
    %v580 = vpow.pop %v579
    %581 = vadd.xlane.f32.xlu0 %v580
    %v582 = vpop.xlane.xlu0 %581
    %v583 = vrcp.pop %v582
    %v584 = vmul.f32 %v582, %v583
    %v585 = vsub.f32 1.0, %v584
    %v586 = vmul.f32 %v583, %v585
    %v587 = vadd.f32 %v583, %v586
    %vm588 = vweird.f32 %v582
    %vm589 = vweird.f32 %v583
    %vm590 = vmor %vm588, %vm589
    %v591 = vsel %vm590, %v583, %v587
    %v592 = vand.u32 2147483647, %v582
    %vm593 = vcmp.eq.f32.partialorder %v592, 8.507059e+37
    %v594 = vand.u32 %v582, 2147483648
    %v595 = vor.u32 1.1754944e-38, %v594
    %v596 = vsel %vm593, %v595, %v591
    %v597 = vmul.f32 1.0, %v596
    %v598 = vmul.f32 %v580, %v597
    %599 = vmax.xlane.f32.xlu0 %v547
    %v600 = vpop.xlane.xlu0 %599
    %v601 = vsub.f32 %v547, %v600
    %v602 = vmul.f32 %v601, 1.442695
    %v603 = vpow.pop %v602
    %604 = vadd.xlane.f32.xlu0 %v603
    %v605 = vpop.xlane.xlu0 %604
    %v606 = vrcp.pop %v605
    %v607 = vmul.f32 %v605, %v606
    %v608 = vsub.f32 1.0, %v607
    %v609 = vmul.f32 %v606, %v608
    %v610 = vadd.f32 %v606, %v609
    %vm611 = vweird.f32 %v605
    %vm612 = vweird.f32 %v606
    %vm613 = vmor %vm611, %vm612
    %v614 = vsel %vm613, %v606, %v610
    %v615 = vand.u32 2147483647, %v605
    %vm616 = vcmp.eq.f32.partialorder %v615, 8.507059e+37
    %v617 = vand.u32 %v605, 2147483648
    %v618 = vor.u32 1.1754944e-38, %v617
    %v619 = vsel %vm616, %v618, %v614
    %v620 = vmul.f32 1.0, %v619
    %v621 = vmul.f32 %v603, %v620
    %622 = vrot.lane.b32.xlu0 %v621, 64
    %v623 = vpop.permute.xlu0 %622
    %v624 = vadd.f32 %v598, %v623
    %625 = vst [vmem:[#allocation11] sm:$0xff] %v624
    %626 = vmax.xlane.f32.xlu0 %v560
    %v627 = vpop.xlane.xlu0 %626
    %v628 = vsub.f32 %v560, %v627
    %v629 = vmul.f32 %v628, 1.442695
    %v630 = vpow.pop %v629
    %631 = vadd.xlane.f32.xlu0 %v630
    %v632 = vpop.xlane.xlu0 %631
    %v633 = vrcp.pop %v632
    %v634 = vmul.f32 %v632, %v633
    %v635 = vsub.f32 1.0, %v634
    %v636 = vmul.f32 %v633, %v635
    %v637 = vadd.f32 %v633, %v636
    %vm638 = vweird.f32 %v632
    %vm639 = vweird.f32 %v633
    %vm640 = vmor %vm638, %vm639
    %v641 = vsel %vm640, %v633, %v637
    %v642 = vand.u32 2147483647, %v632
    %vm643 = vcmp.eq.f32.partialorder %v642, 8.507059e+37
    %v644 = vand.u32 %v632, 2147483648
    %v645 = vor.u32 1.1754944e-38, %v644
    %v646 = vsel %vm643, %v645, %v641
    %v647 = vmul.f32 1.0, %v646
    %v648 = vmul.f32 %v630, %v647
    %649 = vmax.xlane.f32.xlu0 %v573
    %v650 = vpop.xlane.xlu0 %649
    %v651 = vsub.f32 %v573, %v650
    %v652 = vmul.f32 %v651, 1.442695
    %v653 = vpow.pop %v652
    %654 = vadd.xlane.f32.xlu0 %v653
    %v655 = vpop.xlane.xlu0 %654
    %v656 = vrcp.pop %v655
    %v657 = vmul.f32 %v655, %v656
    %v658 = vsub.f32 1.0, %v657
    %v659 = vmul.f32 %v656, %v658
    %v660 = vadd.f32 %v656, %v659
    %vm661 = vweird.f32 %v655
    %vm662 = vweird.f32 %v656
    %vm663 = vmor %vm661, %vm662
    %v664 = vsel %vm663, %v656, %v660
    %v665 = vand.u32 2147483647, %v655
    %vm666 = vcmp.eq.f32.partialorder %v665, 8.507059e+37
    %v667 = vand.u32 %v655, 2147483648
    %v668 = vor.u32 1.1754944e-38, %v667
    %v669 = vsel %vm666, %v668, %v664
    %v670 = vmul.f32 1.0, %v669
    %v671 = vmul.f32 %v653, %v670
    %672 = vrot.lane.b32.xlu0 %v671, 64
    %v673 = vpop.permute.xlu0 %672
    %v674 = vadd.f32 %v648, %v673
    %675 = vst [vmem:[#allocation11 + $0x8] sm:$0xff] %v674
    // Predicated region
    $region58: #{tpu_custom_call.1} parent=1 // pred_check
      _
    $region59: #{tpu_custom_call.1} parent=1 // pred_check_branch
      %677 = sbr.rel (0) target = $region61
    $region60: #{tpu_custom_call.1} parent=1 // pred_region
      %679 = vsyncadd [#allocation4], 0
      %s681 = sshll.u32 [#allocation11], 4
      %s682 = int_to_ptr.vmem [resolvable:$true] %s681
      %s683 = sshll.u32 %s9, 4
      %s684 = int_to_ptr.hbm [resolvable:$true] %s683
      %686 = dma.vmem_to_hbm [thread:$0]  %s682, 256, %s684, [#allocation4]
    $region61: #{tpu_custom_call.1} parent=1 // pred_fallthru
      _
    // Predicated region
    $region62: #{tpu_custom_call.1} parent=1 // pred_check
      _
    $region63: #{tpu_custom_call.1} parent=1 // pred_check_branch
      %688 = sbr.rel (0) target = $region65
    $region64: #{tpu_custom_call.1} parent=1 // pred_region
      %690 = dma.done [#allocation4], 256
    $region65: #{tpu_custom_call.1} parent=1 // pred_fallthru
      _
    %691 = vsyncpa [#allocation3], 1
    %692 = vsyncpa [#allocation6], 1
    %693 = vsyncpa [#allocation9], 1
    %694 = vsyncpa [#allocation4], 1

</llo_original>
